<compile_context>
chip_gen: v5e
topology: v5e:2x2
jax: 0.10.0
libtpu: 0.0.40
codegen_flags: <defaults>
</compile_context>

<pallas_src>
import jax
import jax.numpy as jnp
from jax.experimental import pallas as pl
from jax.experimental.pallas import tpu as pltpu

LANES = 128          # TPU lane width; hidden/output feature dims padded to this
SUBLANES = 8         # f32 sublane tile (batch tiles kept a multiple of this)
MAX_BATCH_TILE = 4096  # cap so tiles stay far inside v7x's 32 MiB VMEM scope


def _round_up(x, m):
    return (x + m - 1) // m * m


def dqn_kernel(x_ref, w1_ref, w23_ref, b_ref, q_ref):
    # Layer 1: relu(x @ W1 + b1).
    # x_ref is the raw-width (bt, S) bf16 tile; contraction runs with K = S
    # directly (no 128-lane inflation of the state in HBM).  f32 accumulate.
    h = jnp.dot(x_ref[...], w1_ref[...], preferred_element_type=jnp.float32)
    h = jnp.maximum(h + b_ref[0:1, :], 0.0)           # f32 epilogue
    # Layer 2: relu(h @ W2 + b2).  bf16 LHS feeds the MXU at native rate on
    # v6e/v7x; accumulation stays f32.
    h = jnp.dot(h.astype(jnp.bfloat16), w23_ref[0],
                preferred_element_type=jnp.float32)
    h = jnp.maximum(h + b_ref[1:2, :], 0.0)           # f32 epilogue
    # Output layer: h @ W3 + b3 (padded action columns remain exactly zero).
    q = jnp.dot(h.astype(jnp.bfloat16), w23_ref[1],
                preferred_element_type=jnp.float32)
    # Single cast fused into the lane-dense bf16 store.
    q_ref[...] = (q + b_ref[2:3, :]).astype(q_ref.dtype)


def pack_params(p):
    """Pack the three Linear layers for the kernel:
       w1_slab : (S, 128)      bf16   (fc1, output-padded to 128)
       w23_slab: (2, 128, 128) bf16   (fc2, output layer, zero-padded)
       b_slab  : (8, 128)      f32    (rows 0..2 = b1,b2,b3, zero-padded)
    Zero padding is exact through relu(x@0 + 0) = 0, so results match the
    unpadded math on the real columns."""
    w1, w2, w3 = p["w1"], p["w2"], p["w3"]
    b1, b2, b3 = p["b1"], p["b2"], p["b3"]
    S, h0 = w1.shape
    assert h0 <= LANES and w2.shape[1] <= LANES and w3.shape[1] <= LANES

    w1_slab = jnp.zeros((S, LANES), jnp.float32).at[:, :h0].set(w1)
    w1_slab = w1_slab.astype(jnp.bfloat16)

    w23_slab = jnp.zeros((2, LANES, LANES), jnp.float32)
    w23_slab = w23_slab.at[0, :w2.shape[0], :w2.shape[1]].set(w2)
    w23_slab = w23_slab.at[1, :w3.shape[0], :w3.shape[1]].set(w3)
    w23_slab = w23_slab.astype(jnp.bfloat16)

    b_slab = jnp.zeros((SUBLANES, LANES), jnp.float32)
    b_slab = b_slab.at[0, :b1.shape[0]].set(b1)
    b_slab = b_slab.at[1, :b2.shape[0]].set(b2)
    b_slab = b_slab.at[2, :b3.shape[0]].set(b3)
    return w1_slab, w23_slab, b_slab


def _dqn_forward_slab_jax(state, w1_slab, w23_slab, b_slab, action_size):
    """Small-batch fallback: same math as the kernel, plain XLA."""
    x = state.astype(jnp.bfloat16)
    h = jax.nn.relu(jnp.dot(x, w1_slab, preferred_element_type=jnp.float32)
                    + b_slab[0])
    h = jax.nn.relu(jnp.dot(h.astype(jnp.bfloat16), w23_slab[0],
                            preferred_element_type=jnp.float32) + b_slab[1])
    q = jnp.dot(h.astype(jnp.bfloat16), w23_slab[1],
                preferred_element_type=jnp.float32) + b_slab[2]
    return q[:, :action_size]


def dqn_forward(state, w1_slab, w23_slab, b_slab, action_size, *,
                batch_tile=512, force_pallas=False):
    """state: (B, state_size) float.  Returns Q-values (B, action_size) f32.

    batch_tile: rows per grid step; sweep 512-2048 for large replay batches.
    """
    B, S = state.shape
    assert S == w1_slab.shape[0], "state width must match packed fc1 slab"

    # Below one batch tile the fixed cost (launch + weight DMA + pipeline
    # prologue) dwarfs three tiny matmuls -> use the fused XLA path.
    if B < batch_tile and not force_pallas:
        return _dqn_forward_slab_jax(state, w1_slab, w23_slab, b_slab,
                                     action_size)

    bt = _round_up(max(SUBLANES, min(batch_tile, MAX_BATCH_TILE, B)), SUBLANES)
    b_pad = _round_up(B, bt)

    # Stream activations in bf16; pad only along the batch axis.
    x = state.astype(jnp.bfloat16)
    if b_pad != B:
        x = jnp.zeros((b_pad, S), jnp.bfloat16).at[:B, :].set(x)

    q_pad = pl.pallas_call(
        dqn_kernel,
        out_shape=jax.ShapeDtypeStruct((b_pad, LANES), jnp.bfloat16),
        grid_spec=pltpu.PrefetchScalarGridSpec(
            num_scalar_prefetch=0,
            grid=(b_pad // bt,),
            in_specs=[
                # Activation tile streams over the batch grid (double-buffered).
                # Last block dim == full array dim S, so no (8,128) issue.
                pl.BlockSpec((bt, S), lambda i: (i, 0)),
                # Weights / biases: constant block index -> VMEM-resident,
                # not re-DMA'd across grid steps.
                pl.BlockSpec((S, LANES), lambda i: (0, 0)),
                pl.BlockSpec((2, LANES, LANES), lambda i: (0, 0, 0)),
                pl.BlockSpec((SUBLANES, LANES), lambda i: (0, 0)),
            ],
            out_specs=pl.BlockSpec((bt, LANES), lambda i: (i, 0)),
        ),
        compiler_params=pltpu.CompilerParams(
            dimension_semantics=("parallel",),       # megacore / 2-TC sharding
            vmem_limit_bytes=32 * 1024 * 1024),      # safe on v5e/v6e/v7x
    )(x, w1_slab, w23_slab, b_slab)

    # Slice padded rows / padded action columns; return f32 like the module.
    return q_pad[:B, :action_size].astype(jnp.float32)


def init_params(key, state_size, action_size, dense_layers=(32, 32)):
    """Deterministic synthetic init matching the nn.Linear layers of DQN
    (weights stored as (fan_in, fan_out), i.e. transposed vs torch storage)."""
    h0, h1 = dense_layers
    ks = jax.random.split(key, 6)

    def lin(kw, kb, fan_in, fan_out):
        bound = 1.0 / jnp.sqrt(jnp.float32(fan_in))
        w = jax.random.uniform(kw, (fan_in, fan_out), jnp.float32, -bound, bound)
        b = jax.random.uniform(kb, (fan_out,), jnp.float32, -bound, bound)
        return w, b

    w1, b1 = lin(ks[0], ks[1], state_size, h0)
    w2, b2 = lin(ks[2], ks[3], h0, h1)
    w3, b3 = lin(ks[4], ks[5], h1, action_size)
    return dict(w1=w1, b1=b1, w2=w2, b2=b2, w3=w3, b3=b3)


def dqn_forward_ref(state, p):
    """Pure-JAX f32 reference for correctness checking."""
    h = jax.nn.relu(state @ p["w1"] + p["b1"])
    h = jax.nn.relu(h @ p["w2"] + p["b2"])
    return h @ p["w3"] + p["b3"]


if __name__ == "__main__":
    # Small shapes consistent with the 'discrete' path of the module.
    B, STATE_SIZE, ACTION_SIZE = 2, 16, 4
    key = jax.random.PRNGKey(0)
    k_params, k_x, k_x2 = jax.random.split(key, 3)

    params = init_params(k_params, STATE_SIZE, ACTION_SIZE, dense_layers=(32, 32))
    w1_slab, w23_slab, b_slab = pack_params(params)

    # 1) Tiny demo batch: force the Pallas path so the kernel itself runs.
    x_small = jax.random.normal(k_x, (B, STATE_SIZE), dtype=jnp.float32)
    q_small = dqn_forward(x_small, w1_slab, w23_slab, b_slab, ACTION_SIZE,
                          force_pallas=True)
    q_small = jax.block_until_ready(q_small)
    ref_small = dqn_forward_ref(x_small, params)
    assert q_small.shape == (B, ACTION_SIZE)
    # bf16 weights/activations with f32 accumulation -> loosened tolerance.
    assert jnp.allclose(q_small, ref_small, atol=5e-2, rtol=5e-2), \
        "small-batch mismatch vs pure-JAX reference"

    # 2) Replay-sized batch: exercises the streamed multi-step parallel grid
    #    (2 grid steps at bt=512), which is what the kernel is optimized for.
    B2 = 1024
    x_big = jax.random.normal(k_x2, (B2, STATE_SIZE), dtype=jnp.float32)
    q_big = jax.block_until_ready(
        dqn_forward(x_big, w1_slab, w23_slab, b_slab, ACTION_SIZE))
    ref_big = dqn_forward_ref(x_big, params)
    assert q_big.shape == (B2, ACTION_SIZE)
    assert jnp.allclose(q_big, ref_big, atol=5e-2, rtol=5e-2), \
        "large-batch mismatch vs pure-JAX reference"

    # TODO(synk): the 'continuous' (Conv3d + BatchNorm3d) branch of DQN is not
    # implemented in Pallas; only the 'discrete' MLP path is covered here.
    print("KERNEL_OK")
</pallas_src>

<mosaic_0001>
module attributes {stable_mosaic.version = 11 : i64} {
  func.func @dqn_kernel(%arg0: i32, %arg1: memref<8x16xbf16, #tpu.memory_space<vmem>>, %arg2: memref<16x128xbf16, #tpu.memory_space<vmem>>, %arg3: memref<2x128x128xbf16, #tpu.memory_space<vmem>>, %arg4: memref<8x128xf32, #tpu.memory_space<vmem>>, %arg5: memref<8x128xbf16, #tpu.memory_space<vmem>>) attributes {dimension_semantics = [#tpu.dimension_semantics<parallel>], iteration_bounds = array<i64: 1>, scalar_prefetch = 0 : i64, scratch_operands = 0 : i64, tpu.core_type = #tpu.core_type<tc>, window_params = [{transform_indices = @transform_0, window_bounds = array<i64: 8, 16>}, {pipeline_mode = #tpu.pipeline_mode<synchronous>, transform_indices = @transform_1, window_bounds = array<i64: 16, 128>}, {pipeline_mode = #tpu.pipeline_mode<synchronous>, transform_indices = @transform_2, window_bounds = array<i64: 2, 128, 128>}, {pipeline_mode = #tpu.pipeline_mode<synchronous>, transform_indices = @transform_3, window_bounds = array<i64: 8, 128>}, {transform_indices = @transform_4, window_bounds = array<i64: 8, 128>}]} {
    %c0 = arith.constant 0 : index
    %c0_0 = arith.constant 0 : index
    %0 = vector.load %arg1[%c0, %c0_0] : memref<8x16xbf16, #tpu.memory_space<vmem>>, vector<8x16xbf16>
    %c0_1 = arith.constant 0 : index
    %c0_2 = arith.constant 0 : index
    %1 = vector.load %arg2[%c0_1, %c0_2] : memref<16x128xbf16, #tpu.memory_space<vmem>>, vector<16x128xbf16>
    %cst = arith.constant dense<0.000000e+00> : vector<8x128xf32>
    %2 = tpu.matmul %0, %1, %cst {dimension_numbers = #tpu.dot_dimension_numbers<[1], [0], [0], [1], [0, 0, 1, 1], [], []>} : vector<8x16xbf16>, vector<16x128xbf16>, vector<8x128xf32> -> vector<8x128xf32>
    %c0_3 = arith.constant 0 : index
    %c0_4 = arith.constant 0 : index
    %3 = vector.load %arg4[%c0_3, %c0_4] : memref<8x128xf32, #tpu.memory_space<vmem>>, vector<1x128xf32>
    %4 = vector.broadcast %3 : vector<1x128xf32> to vector<8x128xf32>
    %5 = arith.addf %2, %4 : vector<8x128xf32>
    %cst_5 = arith.constant 0.000000e+00 : f32
    %6 = vector.broadcast %cst_5 : f32 to vector<8x128xf32>
    %7 = arith.maximumf %5, %6 : vector<8x128xf32>
    %8 = arith.truncf %7 : vector<8x128xf32> to vector<8x128xbf16>
    %c0_6 = arith.constant 0 : index
    %c0_7 = arith.constant 0 : index
    %c0_8 = arith.constant 0 : index
    %9 = vector.load %arg3[%c0_6, %c0_7, %c0_8] : memref<2x128x128xbf16, #tpu.memory_space<vmem>>, vector<1x128x128xbf16>
    %10 = vector.shape_cast %9 : vector<1x128x128xbf16> to vector<128x128xbf16>
    %cst_9 = arith.constant dense<0.000000e+00> : vector<8x128xf32>
    %11 = tpu.matmul %8, %10, %cst_9 {dimension_numbers = #tpu.dot_dimension_numbers<[1], [0], [0], [1], [0, 0, 1, 1], [], []>} : vector<8x128xbf16>, vector<128x128xbf16>, vector<8x128xf32> -> vector<8x128xf32>
    %c1 = arith.constant 1 : index
    %c0_10 = arith.constant 0 : index
    %12 = vector.load %arg4[%c1, %c0_10] : memref<8x128xf32, #tpu.memory_space<vmem>>, vector<1x128xf32>
    %13 = vector.broadcast %12 : vector<1x128xf32> to vector<8x128xf32>
    %14 = arith.addf %11, %13 : vector<8x128xf32>
    %cst_11 = arith.constant 0.000000e+00 : f32
    %15 = vector.broadcast %cst_11 : f32 to vector<8x128xf32>
    %16 = arith.maximumf %14, %15 : vector<8x128xf32>
    %17 = arith.truncf %16 : vector<8x128xf32> to vector<8x128xbf16>
    %c1_12 = arith.constant 1 : index
    %c0_13 = arith.constant 0 : index
    %c0_14 = arith.constant 0 : index
    %18 = vector.load %arg3[%c1_12, %c0_13, %c0_14] : memref<2x128x128xbf16, #tpu.memory_space<vmem>>, vector<1x128x128xbf16>
    %19 = vector.shape_cast %18 : vector<1x128x128xbf16> to vector<128x128xbf16>
    %cst_15 = arith.constant dense<0.000000e+00> : vector<8x128xf32>
    %20 = tpu.matmul %17, %19, %cst_15 {dimension_numbers = #tpu.dot_dimension_numbers<[1], [0], [0], [1], [0, 0, 1, 1], [], []>} : vector<8x128xbf16>, vector<128x128xbf16>, vector<8x128xf32> -> vector<8x128xf32>
    %c2 = arith.constant 2 : index
    %c0_16 = arith.constant 0 : index
    %21 = vector.load %arg4[%c2, %c0_16] : memref<8x128xf32, #tpu.memory_space<vmem>>, vector<1x128xf32>
    %22 = vector.broadcast %21 : vector<1x128xf32> to vector<8x128xf32>
    %23 = arith.addf %20, %22 : vector<8x128xf32>
    %24 = arith.truncf %23 : vector<8x128xf32> to vector<8x128xbf16>
    %c0_17 = arith.constant 0 : index
    %c0_18 = arith.constant 0 : index
    %25 = vector.load %arg5[%c0_17, %c0_18] : memref<8x128xbf16, #tpu.memory_space<vmem>>, vector<8x128xbf16>
    tpu.vector_store %arg5[%c0_17, %c0_18], %24 {strides = array<i32>} : memref<8x128xbf16, #tpu.memory_space<vmem>>, vector<8x128xbf16>,
    return
  }
  func.func @transform_0(%arg0: i32) -> (i32, i32) {
    %c0_i32 = arith.constant 0 : i32
    %c0_i32_0 = arith.constant 0 : i32
    return %arg0, %c0_i32 : i32, i32
  }
  func.func @transform_1(%arg0: i32) -> (i32, i32) {
    %c0_i32 = arith.constant 0 : i32
    %c0_i32_0 = arith.constant 0 : i32
    %c0_i32_1 = arith.constant 0 : i32
    return %c0_i32, %c0_i32_0 : i32, i32
  }
  func.func @transform_2(%arg0: i32) -> (i32, i32, i32) {
    %c0_i32 = arith.constant 0 : i32
    %c0_i32_0 = arith.constant 0 : i32
    %c0_i32_1 = arith.constant 0 : i32
    %c0_i32_2 = arith.constant 0 : i32
    return %c0_i32, %c0_i32_0, %c0_i32_1 : i32, i32, i32
  }
  func.func @transform_3(%arg0: i32) -> (i32, i32) {
    %c0_i32 = arith.constant 0 : i32
    %c0_i32_0 = arith.constant 0 : i32
    %c0_i32_1 = arith.constant 0 : i32
    return %c0_i32, %c0_i32_0 : i32, i32
  }
  func.func @transform_4(%arg0: i32) -> (i32, i32) {
    %c0_i32 = arith.constant 0 : i32
    %c0_i32_0 = arith.constant 0 : i32
    return %arg0, %c0_i32 : i32, i32
  }
}

</mosaic_0001>

<llo_original>
// kernel: tpu_custom_call.1
$region0: #{tpu_custom_call.1}
  #allocation0 [shape = 'u32[]', space=smem, size = 0x4, offset = 0x4, fixed_abs, tag = 'smem constant byte address 0x4 - core index']
  #allocation1 [shape = 'u32[72,128]{1,0:T(1,128)}', space=vmem, size = 0x9000, scoped, tag = 'internal scratch']
  %s0 = inlined_call_operand.hbm [shape: bf16[8,16], index: 0, kind: input, shape index: {}]
  %s1 = inlined_call_operand.hbm [shape: bf16[16,128], index: 1, kind: input, shape index: {}]
  %s2 = inlined_call_operand.hbm [shape: bf16[2,128,128], index: 2, kind: input, shape index: {}]
  %s3 = inlined_call_operand.hbm [shape: f32[8,128], index: 3, kind: input, shape index: {}]
  %s4 = inlined_call_operand.hbm [shape: bf16[8,128], index: 4, kind: output, shape index: {}]
  %s5 = sld [smem:[#allocation0]]
  $region42: #{tpu_custom_call.1} parent=0
    _
  %s7 = ssub.s32 1, %s5
  %s8 = scalar_select 0, %s7, %s5
  $region1: #{tpu_custom_call.1} parent=0
    #allocation2 [shape = 'u8[2048]{0}', space=vmem, size = 0x800, scoped, tag = 'input window, operand 0, single buffered']
    #allocation3 [shape = 's32[1]{0}', space=sflag, size = 0x4, scoped, tag = 'scoped memory for tpu_custom_call.1']
    #allocation4 [shape = 's32[1]{0}', space=sflag, size = 0x4, scoped, tag = 'scoped memory for tpu_custom_call.1']
    #allocation5 [shape = 'u8[4096]{0}', space=vmem, size = 0x1000, scoped, tag = 'input window, operand 1, single buffered']
    #allocation6 [shape = 's32[1]{0}', space=sflag, size = 0x4, scoped, tag = 'scoped memory for tpu_custom_call.1']
    #allocation7 [shape = 'u8[65536]{0}', space=vmem, size = 0x10000, scoped, tag = 'input window, operand 2, single buffered']
    #allocation8 [shape = 'u8[4096]{0}', space=vmem, size = 0x1000, scoped, tag = 'input window, operand 3, single buffered']
    #allocation9 [shape = 's32[1]{0}', space=sflag, size = 0x4, scoped, tag = 'scoped memory for tpu_custom_call.1']
    #allocation10 [shape = 'u8[2048]{0}', space=vmem, size = 0x800, scoped, tag = 'output window, operand 0, single buffered']
    %9 = vsyncpa [#allocation3], 0
    %10 = vsyncpa [#allocation6], 0
    %11 = vsyncpa [#allocation9], 0
    %12 = vsyncpa [#allocation4], 0
    // Predicated region
    $region2: #{tpu_custom_call.1} parent=1 // pred_check
      _
    $region3: #{tpu_custom_call.1} parent=1 // pred_check_branch
      %14 = sbr.rel (0) target = $region5
    $region4: #{tpu_custom_call.1} parent=1 // pred_region
      %16 = vsyncadd [#allocation3], 0
      %s18 = sshll.u32 %s0, 4
      %s19 = int_to_ptr.hbm [resolvable:$true] %s18
      %s20 = sshll.u32 [#allocation2], 4
      %s21 = int_to_ptr.vmem [resolvable:$true] %s20
      %23 = dma.hbm_to_vmem [thread:$0]  %s19, 64, %s21, [#allocation3]
    $region5: #{tpu_custom_call.1} parent=1 // pred_fallthru
      _
    // Predicated region
    $region6: #{tpu_custom_call.1} parent=1 // pred_check
      _
    $region7: #{tpu_custom_call.1} parent=1 // pred_check_branch
      %25 = sbr.rel (0) target = $region9
    $region8: #{tpu_custom_call.1} parent=1 // pred_region
      %27 = vsyncadd [#allocation6], 0
      %s28 = sshll.u32 %s1, 4
      %s29 = int_to_ptr.hbm [resolvable:$true] %s28
      %s30 = sshll.u32 [#allocation5], 4
      %s31 = int_to_ptr.vmem [resolvable:$true] %s30
      %36 = dma.hbm_to_vmem [thread:$0]  %s29, 128, %s31, [#allocation6], 64, 64, 4
    $region9: #{tpu_custom_call.1} parent=1 // pred_fallthru
      _
    // Predicated region
    $region10: #{tpu_custom_call.1} parent=1 // pred_check
      _
    $region11: #{tpu_custom_call.1} parent=1 // pred_check_branch
      %38 = sbr.rel (0) target = $region13
    $region12: #{tpu_custom_call.1} parent=1 // pred_region
      %40 = vsyncadd [#allocation6], 0
      %s41 = sshll.u32 %s2, 4
      %s42 = int_to_ptr.hbm [resolvable:$true] %s41
      %s43 = sshll.u32 [#allocation7], 4
      %s44 = int_to_ptr.vmem [resolvable:$true] %s43
      %49 = dma.hbm_to_vmem [thread:$0]  %s42, 2048, %s44, [#allocation6], 64, 64, 4
    $region13: #{tpu_custom_call.1} parent=1 // pred_fallthru
      _
    // Predicated region
    $region14: #{tpu_custom_call.1} parent=1 // pred_check
      _
    $region15: #{tpu_custom_call.1} parent=1 // pred_check_branch
      %51 = sbr.rel (0) target = $region17
    $region16: #{tpu_custom_call.1} parent=1 // pred_region
      %53 = vsyncadd [#allocation9], 0
      %s55 = sshll.u32 %s3, 4
      %s56 = int_to_ptr.hbm [resolvable:$true] %s55
      %s57 = sshll.u32 [#allocation8], 4
      %s58 = int_to_ptr.vmem [resolvable:$true] %s57
      %60 = dma.hbm_to_vmem [thread:$0]  %s56, 128, %s58, [#allocation9]
    $region17: #{tpu_custom_call.1} parent=1 // pred_fallthru
      _
    // Predicated region
    $region18: #{tpu_custom_call.1} parent=1 // pred_check
      _
    $region19: #{tpu_custom_call.1} parent=1 // pred_check_branch
      %62 = sbr.rel (0) target = $region21
    $region20: #{tpu_custom_call.1} parent=1 // pred_region
      %64 = dma.done [#allocation3], 64
    $region21: #{tpu_custom_call.1} parent=1 // pred_fallthru
      _
    // Predicated region
    $region22: #{tpu_custom_call.1} parent=1 // pred_check
      _
    $region23: #{tpu_custom_call.1} parent=1 // pred_check_branch
      %66 = sbr.rel (0) target = $region25
    $region24: #{tpu_custom_call.1} parent=1 // pred_region
      %68 = dma.done [#allocation6], 128
    $region25: #{tpu_custom_call.1} parent=1 // pred_fallthru
      _
    // Predicated region
    $region26: #{tpu_custom_call.1} parent=1 // pred_check
      _
    $region27: #{tpu_custom_call.1} parent=1 // pred_check_branch
      %70 = sbr.rel (0) target = $region29
    $region28: #{tpu_custom_call.1} parent=1 // pred_region
      %72 = dma.done [#allocation6], 2048
    $region29: #{tpu_custom_call.1} parent=1 // pred_fallthru
      _
    // Predicated region
    $region30: #{tpu_custom_call.1} parent=1 // pred_check
      _
    $region31: #{tpu_custom_call.1} parent=1 // pred_check_branch
      %74 = sbr.rel (0) target = $region33
    $region32: #{tpu_custom_call.1} parent=1 // pred_region
      %76 = dma.done [#allocation9], 128
    $region33: #{tpu_custom_call.1} parent=1 // pred_fallthru
      _
    %v78 = vld [vmem:[#allocation2] sm:$0xf]
    %v79 = vld [vmem:[#allocation5] sm:$0xf]
    %v80 = vld [vmem:[#allocation5 + $0x4] sm:$0xf]
    %v81 = vld [vmem:[#allocation8] sm:$0x1]
    %v82 = vperm.slane %v81, 0
    %v85 = vunpack.c.l.b16 %v79
    %v86 = vunpack.c.l.b16 %v80
    %v87 = vpack.c.b16 %v86, %v85
    %vm89 = vcmask 130048
    %v91 = vsel %vm89, %v78, 0
    %93 = vmatpush.bf16.msra.mxu0 0
    %94 = vmatpush.bf16.msra.mxu0 0
    %95 = vmatpush.bf16.msra.mxu0 0
    %96 = vmatpush.bf16.msra.mxu0 0
    %97 = vmatpush.bf16.msra.mxu0 0
    %98 = vmatpush.bf16.msra.mxu0 0
    %99 = vmatpush.bf16.msra.mxu0 0
    %100 = vmatpush.bf16.msra.mxu0 %v87
    %101 = vmatmul.bf16.gmra.mxu0 %v91
    %v102 = vpop.f32.mrf.mxu0
    %v103 = vadd.f32 %v82, %v102
    %v104 = vpop.f32.mrf.mxu0
    %105 = vdwg.mxu0
    %v106 = vmax.f32 %v103, 0.0
    %v107 = vpack.c.bf16 %v106, %v106
    %v108 = vld [vmem:[#allocation7] sm:$0xf]
    %v109 = vld [vmem:[#allocation7 + $0x4] sm:$0xf]
    %v110 = vld [vmem:[#allocation7 + $0x8] sm:$0xf]
    %v111 = vld [vmem:[#allocation7 + $0xc] sm:$0xf]
    %v112 = vld [vmem:[#allocation7 + $0x10] sm:$0xf]
    %v113 = vld [vmem:[#allocation7 + $0x14] sm:$0xf]
    %v114 = vld [vmem:[#allocation7 + $0x18] sm:$0xf]
    %v115 = vld [vmem:[#allocation7 + $0x1c] sm:$0xf]
    %v116 = vld [vmem:[#allocation7 + $0x20] sm:$0xf]
    %v117 = vld [vmem:[#allocation7 + $0x24] sm:$0xf]
    %v118 = vld [vmem:[#allocation7 + $0x28] sm:$0xf]
    %v119 = vld [vmem:[#allocation7 + $0x2c] sm:$0xf]
    %v120 = vld [vmem:[#allocation7 + $0x30] sm:$0xf]
    %v121 = vld [vmem:[#allocation7 + $0x34] sm:$0xf]
    %v122 = vld [vmem:[#allocation7 + $0x38] sm:$0xf]
    %v123 = vld [vmem:[#allocation7 + $0x3c] sm:$0xf]
    %v124 = vld [vmem:[#allocation8 + $0x1] sm:$0x1]
    %v125 = vperm.slane %v124, 0
    %v142 = vunpack.c.l.b16 %v108
    %v143 = vunpack.c.l.b16 %v109
    %v144 = vunpack.c.l.b16 %v110
    %v145 = vunpack.c.l.b16 %v111
    %v146 = vunpack.c.l.b16 %v112
    %v147 = vunpack.c.l.b16 %v113
    %v148 = vunpack.c.l.b16 %v114
    %v149 = vunpack.c.l.b16 %v115
    %v150 = vunpack.c.l.b16 %v116
    %v151 = vunpack.c.l.b16 %v117
    %v152 = vunpack.c.l.b16 %v118
    %v153 = vunpack.c.l.b16 %v119
    %v154 = vunpack.c.l.b16 %v120
    %v155 = vunpack.c.l.b16 %v121
    %v156 = vunpack.c.l.b16 %v122
    %v157 = vunpack.c.l.b16 %v123
    %v158 = vpack.c.b16 %v143, %v142
    %v159 = vpack.c.b16 %v145, %v144
    %v160 = vpack.c.b16 %v147, %v146
    %v161 = vpack.c.b16 %v149, %v148
    %v162 = vpack.c.b16 %v151, %v150
    %v163 = vpack.c.b16 %v153, %v152
    %v164 = vpack.c.b16 %v155, %v154
    %v165 = vpack.c.b16 %v157, %v156
    %174 = vmatpush.bf16.msra.mxu0 %v165
    %175 = vmatpush.bf16.msra.mxu0 %v164
    %176 = vmatpush.bf16.msra.mxu0 %v163
    %177 = vmatpush.bf16.msra.mxu0 %v162
    %178 = vmatpush.bf16.msra.mxu0 %v161
    %179 = vmatpush.bf16.msra.mxu0 %v160
    %180 = vmatpush.bf16.msra.mxu0 %v159
    %181 = vmatpush.bf16.msra.mxu0 %v158
    %182 = vmatmul.bf16.gmra.mxu0 %v107
    %v183 = vpop.f32.mrf.mxu0
    %v184 = vadd.f32 %v125, %v183
    %v185 = vpop.f32.mrf.mxu0
    %186 = vdwg.mxu0
    %v187 = vmax.f32 %v184, 0.0
    %v188 = vpack.c.bf16 %v187, %v187
    %s189 = scalar_lea.vmem [#allocation7], 64
    %v190 = vld [vmem:[%s189] sm:$0xf]
    %v191 = vld [vmem:[%s189 + $0x4] sm:$0xf]
    %v192 = vld [vmem:[%s189 + $0x8] sm:$0xf]
    %v193 = vld [vmem:[%s189 + $0xc] sm:$0xf]
    %v194 = vld [vmem:[%s189 + $0x10] sm:$0xf]
    %v195 = vld [vmem:[%s189 + $0x14] sm:$0xf]
    %v196 = vld [vmem:[%s189 + $0x18] sm:$0xf]
    %v197 = vld [vmem:[%s189 + $0x1c] sm:$0xf]
    %v198 = vld [vmem:[%s189 + $0x20] sm:$0xf]
    %v199 = vld [vmem:[%s189 + $0x24] sm:$0xf]
    %v200 = vld [vmem:[%s189 + $0x28] sm:$0xf]
    %v201 = vld [vmem:[%s189 + $0x2c] sm:$0xf]
    %v202 = vld [vmem:[%s189 + $0x30] sm:$0xf]
    %v203 = vld [vmem:[%s189 + $0x34] sm:$0xf]
    %v204 = vld [vmem:[%s189 + $0x38] sm:$0xf]
    %v205 = vld [vmem:[%s189 + $0x3c] sm:$0xf]
    %v206 = vld [vmem:[#allocation8 + $0x2] sm:$0x1]
    %v207 = vperm.slane %v206, 0
    %v224 = vunpack.c.l.b16 %v190
    %v225 = vunpack.c.l.b16 %v191
    %v226 = vunpack.c.l.b16 %v192
    %v227 = vunpack.c.l.b16 %v193
    %v228 = vunpack.c.l.b16 %v194
    %v229 = vunpack.c.l.b16 %v195
    %v230 = vunpack.c.l.b16 %v196
    %v231 = vunpack.c.l.b16 %v197
    %v232 = vunpack.c.l.b16 %v198
    %v233 = vunpack.c.l.b16 %v199
    %v234 = vunpack.c.l.b16 %v200
    %v235 = vunpack.c.l.b16 %v201
    %v236 = vunpack.c.l.b16 %v202
    %v237 = vunpack.c.l.b16 %v203
    %v238 = vunpack.c.l.b16 %v204
    %v239 = vunpack.c.l.b16 %v205
    %v240 = vpack.c.b16 %v225, %v224
    %v241 = vpack.c.b16 %v227, %v226
    %v242 = vpack.c.b16 %v229, %v228
    %v243 = vpack.c.b16 %v231, %v230
    %v244 = vpack.c.b16 %v233, %v232
    %v245 = vpack.c.b16 %v235, %v234
    %v246 = vpack.c.b16 %v237, %v236
    %v247 = vpack.c.b16 %v239, %v238
    %256 = vmatpush.bf16.msra.mxu0 %v247
    %257 = vmatpush.bf16.msra.mxu0 %v246
    %258 = vmatpush.bf16.msra.mxu0 %v245
    %259 = vmatpush.bf16.msra.mxu0 %v244
    %260 = vmatpush.bf16.msra.mxu0 %v243
    %261 = vmatpush.bf16.msra.mxu0 %v242
    %262 = vmatpush.bf16.msra.mxu0 %v241
    %263 = vmatpush.bf16.msra.mxu0 %v240
    %264 = vmatmul.bf16.gmra.mxu0 %v188
    %v265 = vpop.f32.mrf.mxu0
    %v266 = vadd.f32 %v207, %v265
    %v267 = vpop.f32.mrf.mxu0
    %268 = vdwg.mxu0
    %v269 = vpack.c.bf16 %v266, %v266
    %270 = vst [vmem:[#allocation10] sm:$0xf] %v269
    // Predicated region
    $region34: #{tpu_custom_call.1} parent=1 // pred_check
      _
    $region35: #{tpu_custom_call.1} parent=1 // pred_check_branch
      %272 = sbr.rel (0) target = $region37
    $region36: #{tpu_custom_call.1} parent=1 // pred_region
      %274 = vsyncadd [#allocation4], 0
      %s276 = sshll.u32 [#allocation10], 4
      %s277 = int_to_ptr.vmem [resolvable:$true] %s276
      %s278 = sshll.u32 %s4, 4
      %s279 = int_to_ptr.hbm [resolvable:$true] %s278
      %281 = dma.vmem_to_hbm [thread:$0]  %s277, 64, %s279, [#allocation4]
    $region37: #{tpu_custom_call.1} parent=1 // pred_fallthru
      _
    // Predicated region
    $region38: #{tpu_custom_call.1} parent=1 // pred_check
      _
    $region39: #{tpu_custom_call.1} parent=1 // pred_check_branch
      %283 = sbr.rel (0) target = $region41
    $region40: #{tpu_custom_call.1} parent=1 // pred_region
      %285 = dma.done [#allocation4], 64
    $region41: #{tpu_custom_call.1} parent=1 // pred_fallthru
      _
    %286 = vsyncpa [#allocation3], 1
    %287 = vsyncpa [#allocation6], 1
    %288 = vsyncpa [#allocation9], 1
    %289 = vsyncpa [#allocation4], 1

</llo_original>
